<compile_context>
chip_gen: v7x
topology: tpu7x:2x2x1
jax: 0.10.0
libtpu: 0.0.40
codegen_flags: <defaults>
</compile_context>

<pallas_src>
import jax
import jax.numpy as jnp
from jax.experimental import pallas as pl
from jax.experimental.pallas import tpu as pltpu


def _identity_kernel(x_ref, o_ref):
    # Straight VMEM load -> VMEM store of the current tile.
    o_ref[...] = x_ref[...]


_TARGET_TILE_BYTES = 6 * 1024 * 1024   # per-buffer tile (~6 MiB)
_VMEM_LIMIT_BYTES = 40 * 1024 * 1024   # 1 in + 1 out, double-buffered, + slack
_MIN_STEPS_BYTES = 8 * 1024 * 1024     # above this, keep >= 4 row blocks (v7x: 2 TCs)
_MAX_LANE_COLS = 8192                  # cap for the lane-dense re-view


def _sublane_multiple(itemsize: int) -> int:
    # Packed min-tile second-minor size: 8 (32-bit), 16 (16-bit), 32 (8-bit).
    return 8 * max(1, 4 // max(1, itemsize))


def _choose_view(x: jax.Array):
    """Pick a (rows, cols) 2-D view of x.

    A contiguous full flatten/reshape is layout-preserving (free), so whenever
    the total size is a multiple of 128 we choose cols as a multiple of 128
    (lane-dense stores). Otherwise we only collapse the leading dims.
    """
    n = x.size
    if n % 128 == 0:
        max_k = min(n // 128, _MAX_LANE_COLS // 128)
        cols = 128
        for k in range(max_k, 0, -1):
            c = 128 * k
            if n % c == 0:
                cols = c
                break
        return n // cols, cols
    if x.ndim >= 2:
        cols = x.shape[-1]
        return n // cols, cols
    return 1, n


def _choose_tiles(rows: int, cols: int, itemsize: int):
    sub = _sublane_multiple(itemsize)
    budget = _TARGET_TILE_BYTES

    # Column tile: full width if `sub` rows of it fit the budget; otherwise a
    # 128-lane-multiple slice sized to the budget (keeps VMEM bounded for wide
    # rows / large 1-D inputs).
    if cols * itemsize * sub <= budget:
        tile_cols = cols
    else:
        tc = budget // (itemsize * sub)
        tile_cols = min(cols, max(128, (tc // 128) * 128))

    # Row tile: fill the budget, aligned to the dtype's sublane multiple.
    tile_rows = budget // max(1, tile_cols * itemsize)
    tile_rows = max(sub, (tile_rows // sub) * sub)

    # Keep >= ~4 blocks for larger arrays so pipelining stays live and both
    # v7x TensorCores get work on the "parallel" axes.
    if rows * cols * itemsize > _MIN_STEPS_BYTES:
        want = -(-rows // 4)                       # cdiv(rows, 4)
        want = max(sub, ((want + sub - 1) // sub) * sub)
        tile_rows = min(tile_rows, want)

    if tile_rows >= rows:
        tile_rows = rows  # full extent waives the sublane divisibility rule
    return tile_rows, tile_cols


@jax.jit
def identity_pallas(x: jax.Array) -> jax.Array:
    """Identity forward pass: returns x unchanged (same shape, same dtype)."""
    if x.size == 0:
        return x

    orig_shape = x.shape
    rows, cols = _choose_view(x)
    x2d = x.reshape(rows, cols)

    tile_rows, tile_cols = _choose_tiles(rows, cols, x.dtype.itemsize)
    grid = (pl.cdiv(rows, tile_rows), pl.cdiv(cols, tile_cols))

    out2d = pl.pallas_call(
        _identity_kernel,
        out_shape=jax.ShapeDtypeStruct((rows, cols), x.dtype),
        grid_spec=pltpu.PrefetchScalarGridSpec(
            num_scalar_prefetch=0,
            grid=grid,
            in_specs=[pl.BlockSpec((tile_rows, tile_cols), lambda i, j: (i, j))],
            out_specs=pl.BlockSpec((tile_rows, tile_cols), lambda i, j: (i, j)),
        ),
        compiler_params=pltpu.CompilerParams(
            dimension_semantics=("parallel", "parallel"),
            vmem_limit_bytes=_VMEM_LIMIT_BYTES,
        ),
    )(x2d)

    return out2d.reshape(orig_shape)


if __name__ == "__main__":
    key = jax.random.PRNGKey(0)

    # Small NCHW input consistent with a typical transfer-learning feature map.
    x = jax.random.normal(key, (2, 4, 16, 16), dtype=jnp.float32)
    y = identity_pallas(x)
    jax.block_until_ready(y)
    assert y.shape == x.shape, (y.shape, x.shape)
    assert y.dtype == x.dtype, (y.dtype, x.dtype)
    assert bool(jnp.array_equal(y, x)), "identity kernel output mismatch (f32)"

    # Exercise the packed-dtype (lane-dense) path.
    xb = jax.random.normal(key, (4, 8, 48), dtype=jnp.bfloat16)
    yb = identity_pallas(xb)
    jax.block_until_ready(yb)
    assert yb.shape == xb.shape and yb.dtype == xb.dtype
    assert bool(jnp.array_equal(yb, xb)), "identity kernel output mismatch (bf16)"

    # Exercise the non-128-divisible fallback path.
    xo = jax.random.normal(key, (3, 5, 7), dtype=jnp.float32)
    yo = identity_pallas(xo)
    jax.block_until_ready(yo)
    assert yo.shape == xo.shape and yo.dtype == xo.dtype
    assert bool(jnp.array_equal(yo, xo)), "identity kernel output mismatch (odd)"

    print("KERNEL_OK")
</pallas_src>

<mosaic_0001>
module attributes {stable_mosaic.version = 11 : i64} {
  func.func @_identity_kernel(%arg0: i32, %arg1: i32, %arg2: memref<1x2048xf32, #tpu.memory_space<vmem>>, %arg3: memref<1x2048xf32, #tpu.memory_space<vmem>>) attributes {dimension_semantics = [#tpu.dimension_semantics<parallel>, #tpu.dimension_semantics<parallel>], iteration_bounds = array<i64: 1, 1>, scalar_prefetch = 0 : i64, scratch_operands = 0 : i64, tpu.core_type = #tpu.core_type<tc>, window_params = [{transform_indices = @transform_0, window_bounds = array<i64: 1, 2048>}, {transform_indices = @transform_1, window_bounds = array<i64: 1, 2048>}]} {
    %c0 = arith.constant 0 : index
    %c0_0 = arith.constant 0 : index
    %0 = vector.load %arg2[%c0, %c0_0] : memref<1x2048xf32, #tpu.memory_space<vmem>>, vector<1x2048xf32>
    %c0_1 = arith.constant 0 : index
    %c0_2 = arith.constant 0 : index
    %1 = vector.load %arg3[%c0_1, %c0_2] : memref<1x2048xf32, #tpu.memory_space<vmem>>, vector<1x2048xf32>
    tpu.vector_store %arg3[%c0_1, %c0_2], %0 {strides = array<i32>} : memref<1x2048xf32, #tpu.memory_space<vmem>>, vector<1x2048xf32>,
    return
  }
  func.func @transform_0(%arg0: i32, %arg1: i32) -> (i32, i32) {
    %c0_i32 = arith.constant 0 : i32
    return %arg0, %arg1 : i32, i32
  }
  func.func @transform_1(%arg0: i32, %arg1: i32) -> (i32, i32) {
    %c0_i32 = arith.constant 0 : i32
    return %arg0, %arg1 : i32, i32
  }
}

</mosaic_0001>

<llo_original>
// kernel: identity_pallas.1
$region0: #{identity_pallas.1}
  #allocation0 [shape = 'u32[]', space=smem, size = 0x4, offset = 0x4, fixed_abs, tag = 'smem constant byte address 0x4 - core index']
  #allocation1 [shape = 'u32[144,128]{1,0:T(1,128)}', space=vmem, size = 0x12000, scoped, tag = 'internal scratch']
  %s0 = inlined_call_operand.vmem [shape: f32[1,2048], index: 0, kind: input, shape index: {}]
  %s1 = inlined_call_operand.vmem [shape: f32[1,2048], index: 1, kind: output, shape index: {}]
  %s2 = sld [smem:[#allocation0]]
  $region14: #{identity_pallas.1} parent=0
    _
  %s4 = ssub.s32 1, %s2
  %s5 = scalar_select 0, %s4, %s2
  // Predicated region
  $region2: #{identity_pallas.1} parent=0 // pred_check
    _
  $region3: #{identity_pallas.1} parent=0 // pred_check_branch
    %7 = sbr.rel (0) target = $region5
  $region4: #{identity_pallas.1} parent=0 // pred_region
    _
  $region5: #{identity_pallas.1} parent=0 // pred_fallthru
    _
  %v8 = vld [vmem:[%s0] sm:$0xff]
  %v9 = vld [vmem:[%s0 + $0x8] sm:$0xff]
  %10 = vst [vmem:[%s1] sm:$0xff] %v8
  %11 = vst [vmem:[%s1 + $0x8] sm:$0xff] %v9
  // Predicated region
  $region6: #{identity_pallas.1} parent=0 // pred_check
    _
  $region7: #{identity_pallas.1} parent=0 // pred_check_branch
    %13 = sbr.rel (0) target = $region9
  $region8: #{identity_pallas.1} parent=0 // pred_region
    _
  $region9: #{identity_pallas.1} parent=0 // pred_fallthru
    _
  // Predicated region
  $region10: #{identity_pallas.1} parent=0 // pred_check
    _
  $region11: #{identity_pallas.1} parent=0 // pred_check_branch
    %15 = sbr.rel (0) target = $region13
  $region12: #{identity_pallas.1} parent=0 // pred_region
    _
  $region13: #{identity_pallas.1} parent=0 // pred_fallthru
    _

</llo_original>
